<compile_context>
chip_gen: v6e
topology: v6e:2x2x1
jax: 0.10.0
libtpu: 0.0.40
codegen_flags: <defaults>
</compile_context>

<pallas_src>
import jax
import jax.numpy as jnp
from jax.experimental import pallas as pl
from jax.experimental.pallas import tpu as pltpu

NEG_SLOPE = 0.01  # F.leaky_relu default negative_slope


def _choose_tile_h(H, W, C, O, budget_bytes=4 << 20):
    """Largest H-tile whose big in+out blocks stay under budget_bytes.

    Constraints (from the BlockSpecs used below): tH divides H and
    (tH % 8 == 0 or tH == H).  Budgeting the big block to a few MiB keeps
    the double-buffered working set far inside every generation's scoped
    VMEM while staying near the HBM roofline.
    """
    bytes_per_row = W * (C + O) * 4  # f32 in + out per H row
    max_rows = max(1, budget_bytes // max(1, bytes_per_row))
    if H <= max_rows:
        return H
    cands = [d for d in range(8, H + 1, 8) if H % d == 0 and d <= max_rows]
    if cands:
        return max(cands)
    cands8 = [d for d in range(8, H + 1, 8) if H % d == 0]
    return min(cands8) if cands8 else H


def _pcsnp_kernel(x_hw_ref, x_h_ref, x_w_ref,
                  w_hw_ref, w_h_ref, w_w_ref, b_ref,
                  out_full_ref, out_h_ref, out_w_ref,
                  yw_sc):
    h = pl.program_id(1)

    _, tH, W, C = x_hw_ref.shape
    O = w_hw_ref.shape[1]

    # Hoisted per-batch work: y_w = x_w @ w_w (+ all biases folded in),
    # computed on the first H tile of each batch and reused from VMEM scratch.
    @pl.when(h == 0)
    def _():
        yw_sc[...] = (jnp.dot(x_w_ref[0], w_w_ref[...],
                              preferred_element_type=jnp.float32)
                      + b_ref[...])                       # (W, O)

    # 1x1 convolutions == channel matmuls on the MXU.
    x_hw = x_hw_ref[0]                                    # (tH, W, C)
    if W % 8 == 0:
        # explicit 2-D matmul with M = tH*W (layout-preserving reshapes)
        y_flat = jnp.dot(x_hw.reshape(tH * W, C), w_hw_ref[...],
                         preferred_element_type=jnp.float32)
        y_hw = y_flat.reshape(tH, W, O)
    else:
        y_hw = jax.lax.dot_general(x_hw, w_hw_ref[...], (((2,), (0,)), ((), ())),
                                   preferred_element_type=jnp.float32)

    y_h = jnp.dot(x_h_ref[0], w_h_ref[...],
                  preferred_element_type=jnp.float32)     # (tH, O)

    # broadcast sum over (tH, W, O) + leaky_relu
    s = y_hw + y_h[:, None, :] + yw_sc[...][None, :, :]
    act = jnp.maximum(s, NEG_SLOPE * s)

    # outputs / final pooling
    out_full_ref[0] = act                                 # code (1,1)
    out_h_ref[0] = jnp.max(act, axis=1)                   # code (1,0): pool over W

    # code (0,1): pool over H -> cross-tile running max (accumulator block)
    tile_max = jnp.max(act, axis=0)                       # (W, O)

    @pl.when(h == 0)
    def _():
        out_w_ref[0] = tile_max

    @pl.when(h > 0)
    def _():
        out_w_ref[0] = jnp.maximum(out_w_ref[0], tile_max)


def pool_conv_sum_nonlin_pool(x_11_nchw, x_10_ncl, x_01_ncl, params,
                              *, tile_h=None):
    """x_11: (B,C,H,W), x_10: (B,C,H), x_01: (B,C,W). Returns dict code->tensor (torch layout)."""
    B, C, H, W = x_11_nchw.shape
    O = params["w_hw"].shape[1]

    # NCHW -> channels-last (XLA glue; lanes = channels inside the kernel)
    x_hw = jnp.transpose(x_11_nchw, (0, 2, 3, 1)).astype(jnp.float32)  # (B,H,W,C)
    x_h = jnp.transpose(x_10_ncl, (0, 2, 1)).astype(jnp.float32)       # (B,H,C)
    x_w = jnp.transpose(x_01_ncl, (0, 2, 1)).astype(jnp.float32)       # (B,W,C)

    # fold the three conv biases into a single add
    b_total = (params["b_hw"] + params["b_h"] + params["b_w"]).reshape(1, O)
    b_total = b_total.astype(jnp.float32)

    tH = tile_h if tile_h is not None else _choose_tile_h(H, W, C, O)
    assert H % tH == 0 and (tH % 8 == 0 or tH == H), (H, tH)
    nH = H // tH

    grid_spec = pltpu.PrefetchScalarGridSpec(
        num_scalar_prefetch=0,
        grid=(B, nH),
        in_specs=[
            pl.BlockSpec((1, tH, W, C), lambda b, h: (b, h, 0, 0)),
            pl.BlockSpec((1, tH, C), lambda b, h: (b, h, 0)),
            pl.BlockSpec((1, W, C), lambda b, h: (b, 0, 0)),   # constant over h
            pl.BlockSpec((C, O), lambda b, h: (0, 0)),
            pl.BlockSpec((C, O), lambda b, h: (0, 0)),
            pl.BlockSpec((C, O), lambda b, h: (0, 0)),
            pl.BlockSpec((1, O), lambda b, h: (0, 0)),
        ],
        out_specs=[
            pl.BlockSpec((1, tH, W, O), lambda b, h: (b, h, 0, 0)),
            pl.BlockSpec((1, tH, O), lambda b, h: (b, h, 0)),
            pl.BlockSpec((1, W, O), lambda b, h: (b, 0, 0)),   # accumulator over h
        ],
        scratch_shapes=[pltpu.VMEM((W, O), jnp.float32)],      # hoisted y_w (+bias)
    )

    out_full, out_h, out_w = pl.pallas_call(
        _pcsnp_kernel,
        out_shape=(
            jax.ShapeDtypeStruct((B, H, W, O), jnp.float32),
            jax.ShapeDtypeStruct((B, H, O), jnp.float32),
            jax.ShapeDtypeStruct((B, W, O), jnp.float32),
        ),
        grid_spec=grid_spec,
        compiler_params=pltpu.CompilerParams(
            dimension_semantics=("parallel", "arbitrary"),
            vmem_limit_bytes=32 * 1024 * 1024,
        ),
    )(x_hw, x_h, x_w,
      params["w_hw"], params["w_h"], params["w_w"], b_total)

    # back to torch (NCHW) conventions, pooled axes kept with keepdim=True
    out_code_11 = jnp.transpose(out_full, (0, 3, 1, 2))            # (B, O, H, W)
    out_code_10 = jnp.transpose(out_h, (0, 2, 1))[..., None]       # (B, O, H, 1)
    out_code_01 = jnp.transpose(out_w, (0, 2, 1))[:, :, None, :]   # (B, O, 1, W)
    return {(1, 1): out_code_11, (1, 0): out_code_10, (0, 1): out_code_01}


def _reference(x_11, x_10, x_01, p):
    """Pure-JAX reference of the torch forward (NCHW)."""
    y_hw = jnp.einsum("bchw,co->bohw", x_11, p["w_hw"]) + p["b_hw"][0][None, :, None, None]
    y_h = jnp.einsum("bch,co->boh", x_10, p["w_h"]) + p["b_h"][0][None, :, None]
    y_w = jnp.einsum("bcw,co->bow", x_01, p["w_w"]) + p["b_w"][0][None, :, None]
    s = y_hw + y_h[..., None] + y_w[:, :, None, :]
    act = jnp.where(s >= 0, s, NEG_SLOPE * s)
    return {
        (1, 1): act,
        (1, 0): jnp.max(act, axis=3, keepdims=True),
        (0, 1): jnp.max(act, axis=2, keepdims=True),
    }


if __name__ == "__main__":
    B, C, O, H, W = 2, 4, 8, 16, 16
    key = jax.random.PRNGKey(0)
    k = jax.random.split(key, 9)

    # deterministic synthetic parameters (conv 1x1 weights stored as (C, O))
    params = {
        "w_hw": jax.random.normal(k[0], (C, O), jnp.float32) * 0.1,
        "w_h": jax.random.normal(k[1], (C, O), jnp.float32) * 0.1,
        "w_w": jax.random.normal(k[2], (C, O), jnp.float32) * 0.1,
        "b_hw": jax.random.normal(k[3], (1, O), jnp.float32) * 0.1,
        "b_h": jax.random.normal(k[4], (1, O), jnp.float32) * 0.1,
        "b_w": jax.random.normal(k[5], (1, O), jnp.float32) * 0.1,
    }

    # example Feature_Collection inputs in torch layout
    x_11 = jax.random.normal(k[6], (B, C, H, W), jnp.float32)   # code (1,1)
    x_10 = jax.random.normal(k[7], (B, C, H), jnp.float32)      # code (1,0)
    x_01 = jax.random.normal(k[8], (B, C, W), jnp.float32)      # code (0,1)

    # tile_h=8 forces two H tiles so the cross-tile max accumulator path
    # (code (0,1) output) is exercised even at this small demo size.
    out = pool_conv_sum_nonlin_pool(x_11, x_10, x_01, params, tile_h=8)
    out = jax.tree_util.tree_map(jax.block_until_ready, out)

    ref = _reference(x_11, x_10, x_01, params)
    for code in ref:
        assert out[code].shape == ref[code].shape, (code, out[code].shape, ref[code].shape)
        assert jnp.allclose(out[code], ref[code], atol=1e-5, rtol=1e-5), code

    print("KERNEL_OK")
</pallas_src>

<mosaic_0001>
module attributes {stable_mosaic.version = 11 : i64} {
  func.func @_pcsnp_kernel(%arg0: i32, %arg1: i32, %arg2: memref<1x8x16x4xf32, #tpu.memory_space<vmem>>, %arg3: memref<1x8x4xf32, #tpu.memory_space<vmem>>, %arg4: memref<1x16x4xf32, #tpu.memory_space<vmem>>, %arg5: memref<4x8xf32, #tpu.memory_space<vmem>>, %arg6: memref<4x8xf32, #tpu.memory_space<vmem>>, %arg7: memref<4x8xf32, #tpu.memory_space<vmem>>, %arg8: memref<1x8xf32, #tpu.memory_space<vmem>>, %arg9: memref<1x8x16x8xf32, #tpu.memory_space<vmem>>, %arg10: memref<1x8x8xf32, #tpu.memory_space<vmem>>, %arg11: memref<1x16x8xf32, #tpu.memory_space<vmem>>, %arg12: memref<16x8xf32, #tpu.memory_space<vmem>>) attributes {dimension_semantics = [#tpu.dimension_semantics<parallel>, #tpu.dimension_semantics<arbitrary>], iteration_bounds = array<i64: 2, 2>, scalar_prefetch = 0 : i64, scratch_operands = 1 : i64, tpu.core_type = #tpu.core_type<tc>, window_params = [{transform_indices = @transform_0, window_bounds = array<i64: 1, 8, 16, 4>}, {transform_indices = @transform_1, window_bounds = array<i64: 1, 8, 4>}, {transform_indices = @transform_2, window_bounds = array<i64: 1, 16, 4>}, {pipeline_mode = #tpu.pipeline_mode<synchronous>, transform_indices = @transform_3, window_bounds = array<i64: 4, 8>}, {pipeline_mode = #tpu.pipeline_mode<synchronous>, transform_indices = @transform_4, window_bounds = array<i64: 4, 8>}, {pipeline_mode = #tpu.pipeline_mode<synchronous>, transform_indices = @transform_5, window_bounds = array<i64: 4, 8>}, {pipeline_mode = #tpu.pipeline_mode<synchronous>, transform_indices = @transform_6, window_bounds = array<i64: 1, 8>}, {transform_indices = @transform_7, window_bounds = array<i64: 1, 8, 16, 8>}, {transform_indices = @transform_8, window_bounds = array<i64: 1, 8, 8>}, {transform_indices = @transform_9, window_bounds = array<i64: 1, 16, 8>}]} {
    %c0_i32 = arith.constant 0 : i32
    %0 = arith.cmpi eq, %arg1, %c0_i32 : i32
    %1 = arith.extui %0 : i1 to i32
    %c0_i32_0 = arith.constant 0 : i32
    %2 = arith.cmpi ne, %1, %c0_i32_0 : i32
    scf.if %2 {
      %c0_28 = arith.constant 0 : index
      %c0_29 = arith.constant 0 : index
      %c0_30 = arith.constant 0 : index
      %37 = vector.load %arg4[%c0_28, %c0_29, %c0_30] : memref<1x16x4xf32, #tpu.memory_space<vmem>>, vector<1x16x4xf32>
      %38 = vector.shape_cast %37 : vector<1x16x4xf32> to vector<16x4xf32>
      %c0_31 = arith.constant 0 : index
      %c0_32 = arith.constant 0 : index
      %39 = vector.load %arg7[%c0_31, %c0_32] : memref<4x8xf32, #tpu.memory_space<vmem>>, vector<4x8xf32>
      %cst_33 = arith.constant dense<0.000000e+00> : vector<16x8xf32>
      %40 = tpu.matmul %38, %39, %cst_33 {dimension_numbers = #tpu.dot_dimension_numbers<[1], [0], [0], [1], [0, 0, 1, 1], [], []>} : vector<16x4xf32>, vector<4x8xf32>, vector<16x8xf32> -> vector<16x8xf32>
      %c0_34 = arith.constant 0 : index
      %c0_35 = arith.constant 0 : index
      %41 = vector.load %arg8[%c0_34, %c0_35] : memref<1x8xf32, #tpu.memory_space<vmem>>, vector<1x8xf32>
      %42 = vector.broadcast %41 : vector<1x8xf32> to vector<16x8xf32>
      %43 = arith.addf %40, %42 : vector<16x8xf32>
      %c0_36 = arith.constant 0 : index
      %c0_37 = arith.constant 0 : index
      %44 = vector.load %arg12[%c0_36, %c0_37] : memref<16x8xf32, #tpu.memory_space<vmem>>, vector<16x8xf32>
      tpu.vector_store %arg12[%c0_36, %c0_37], %43 {strides = array<i32>} : memref<16x8xf32, #tpu.memory_space<vmem>>, vector<16x8xf32>,
    } else {
    }
    %c0 = arith.constant 0 : index
    %c0_1 = arith.constant 0 : index
    %c0_2 = arith.constant 0 : index
    %c0_3 = arith.constant 0 : index
    %3 = vector.load %arg2[%c0, %c0_1, %c0_2, %c0_3] : memref<1x8x16x4xf32, #tpu.memory_space<vmem>>, vector<1x8x16x4xf32>
    %4 = vector.shape_cast %3 : vector<1x8x16x4xf32> to vector<8x16x4xf32>
    %5 = vector.shape_cast %4 : vector<8x16x4xf32> to vector<128x4xf32>
    %c0_4 = arith.constant 0 : index
    %c0_5 = arith.constant 0 : index
    %6 = vector.load %arg5[%c0_4, %c0_5] : memref<4x8xf32, #tpu.memory_space<vmem>>, vector<4x8xf32>
    %cst = arith.constant dense<0.000000e+00> : vector<128x8xf32>
    %7 = tpu.matmul %5, %6, %cst {dimension_numbers = #tpu.dot_dimension_numbers<[1], [0], [0], [1], [0, 0, 1, 1], [], []>} : vector<128x4xf32>, vector<4x8xf32>, vector<128x8xf32> -> vector<128x8xf32>
    %8 = vector.shape_cast %7 : vector<128x8xf32> to vector<8x16x8xf32>
    %c0_6 = arith.constant 0 : index
    %c0_7 = arith.constant 0 : index
    %c0_8 = arith.constant 0 : index
    %9 = vector.load %arg3[%c0_6, %c0_7, %c0_8] : memref<1x8x4xf32, #tpu.memory_space<vmem>>, vector<1x8x4xf32>
    %10 = vector.shape_cast %9 : vector<1x8x4xf32> to vector<8x4xf32>
    %c0_9 = arith.constant 0 : index
    %c0_10 = arith.constant 0 : index
    %11 = vector.load %arg6[%c0_9, %c0_10] : memref<4x8xf32, #tpu.memory_space<vmem>>, vector<4x8xf32>
    %cst_11 = arith.constant dense<0.000000e+00> : vector<8x8xf32>
    %12 = tpu.matmul %10, %11, %cst_11 {dimension_numbers = #tpu.dot_dimension_numbers<[1], [0], [0], [1], [0, 0, 1, 1], [], []>} : vector<8x4xf32>, vector<4x8xf32>, vector<8x8xf32> -> vector<8x8xf32>
    %13 = vector.shape_cast %12 : vector<8x8xf32> to vector<8x1x8xf32>
    %14 = vector.broadcast %13 : vector<8x1x8xf32> to vector<8x16x8xf32>
    %15 = arith.addf %8, %14 : vector<8x16x8xf32>
    %c0_12 = arith.constant 0 : index
    %c0_13 = arith.constant 0 : index
    %16 = vector.load %arg12[%c0_12, %c0_13] : memref<16x8xf32, #tpu.memory_space<vmem>>, vector<16x8xf32>
    %17 = vector.shape_cast %16 : vector<16x8xf32> to vector<1x16x8xf32>
    %18 = vector.broadcast %17 : vector<1x16x8xf32> to vector<8x16x8xf32>
    %19 = arith.addf %15, %18 : vector<8x16x8xf32>
    %cst_14 = arith.constant 0.00999999977 : f32
    %20 = vector.broadcast %cst_14 : f32 to vector<8x16x8xf32>
    %21 = arith.mulf %20, %19 : vector<8x16x8xf32>
    %22 = arith.maximumf %19, %21 : vector<8x16x8xf32>
    %c0_15 = arith.constant 0 : index
    %c0_16 = arith.constant 0 : index
    %c0_17 = arith.constant 0 : index
    %c0_18 = arith.constant 0 : index
    %23 = vector.load %arg9[%c0_15, %c0_16, %c0_17, %c0_18] : memref<1x8x16x8xf32, #tpu.memory_space<vmem>>, vector<1x8x16x8xf32>
    %24 = vector.shape_cast %23 : vector<1x8x16x8xf32> to vector<8x16x8xf32>
    %25 = vector.shape_cast %22 : vector<8x16x8xf32> to vector<1x8x16x8xf32>
    tpu.vector_store %arg9[%c0_15, %c0_16, %c0_17, %c0_18], %25 {strides = array<i32>} : memref<1x8x16x8xf32, #tpu.memory_space<vmem>>, vector<1x8x16x8xf32>,
    %cst_19 = arith.constant dense<0xFF800000> : vector<8x8xf32>
    %26 = vector.multi_reduction <maximumf>, %22, %cst_19 [1] : vector<8x16x8xf32> to vector<8x8xf32>
    %c0_20 = arith.constant 0 : index
    %c0_21 = arith.constant 0 : index
    %c0_22 = arith.constant 0 : index
    %27 = vector.load %arg10[%c0_20, %c0_21, %c0_22] : memref<1x8x8xf32, #tpu.memory_space<vmem>>, vector<1x8x8xf32>
    %28 = vector.shape_cast %27 : vector<1x8x8xf32> to vector<8x8xf32>
    %29 = vector.shape_cast %26 : vector<8x8xf32> to vector<1x8x8xf32>
    tpu.vector_store %arg10[%c0_20, %c0_21, %c0_22], %29 {strides = array<i32>} : memref<1x8x8xf32, #tpu.memory_space<vmem>>, vector<1x8x8xf32>,
    %cst_23 = arith.constant dense<0xFF800000> : vector<16x8xf32>
    %30 = vector.multi_reduction <maximumf>, %22, %cst_23 [0] : vector<8x16x8xf32> to vector<16x8xf32>
    %c0_i32_24 = arith.constant 0 : i32
    %31 = arith.cmpi eq, %arg1, %c0_i32_24 : i32
    %32 = arith.extui %31 : i1 to i32
    %c0_i32_25 = arith.constant 0 : i32
    %33 = arith.cmpi ne, %32, %c0_i32_25 : i32
    scf.if %33 {
      %c0_28 = arith.constant 0 : index
      %c0_29 = arith.constant 0 : index
      %c0_30 = arith.constant 0 : index
      %37 = vector.load %arg11[%c0_28, %c0_29, %c0_30] : memref<1x16x8xf32, #tpu.memory_space<vmem>>, vector<1x16x8xf32>
      %38 = vector.shape_cast %37 : vector<1x16x8xf32> to vector<16x8xf32>
      %39 = vector.shape_cast %30 : vector<16x8xf32> to vector<1x16x8xf32>
      tpu.vector_store %arg11[%c0_28, %c0_29, %c0_30], %39 {strides = array<i32>} : memref<1x16x8xf32, #tpu.memory_space<vmem>>, vector<1x16x8xf32>,
    } else {
    }
    %c0_i32_26 = arith.constant 0 : i32
    %34 = arith.cmpi sgt, %arg1, %c0_i32_26 : i32
    %35 = arith.extui %34 : i1 to i32
    %c0_i32_27 = arith.constant 0 : i32
    %36 = arith.cmpi ne, %35, %c0_i32_27 : i32
    scf.if %36 {
      %c0_28 = arith.constant 0 : index
      %c0_29 = arith.constant 0 : index
      %c0_30 = arith.constant 0 : index
      %37 = vector.load %arg11[%c0_28, %c0_29, %c0_30] : memref<1x16x8xf32, #tpu.memory_space<vmem>>, vector<1x16x8xf32>
      %38 = vector.shape_cast %37 : vector<1x16x8xf32> to vector<16x8xf32>
      %39 = arith.maximumf %38, %30 : vector<16x8xf32>
      %c0_31 = arith.constant 0 : index
      %c0_32 = arith.constant 0 : index
      %c0_33 = arith.constant 0 : index
      %40 = vector.load %arg11[%c0_31, %c0_32, %c0_33] : memref<1x16x8xf32, #tpu.memory_space<vmem>>, vector<1x16x8xf32>
      %41 = vector.shape_cast %40 : vector<1x16x8xf32> to vector<16x8xf32>
      %42 = vector.shape_cast %39 : vector<16x8xf32> to vector<1x16x8xf32>
      tpu.vector_store %arg11[%c0_31, %c0_32, %c0_33], %42 {strides = array<i32>} : memref<1x16x8xf32, #tpu.memory_space<vmem>>, vector<1x16x8xf32>,
    } else {
    }
    return
  }
  func.func @transform_0(%arg0: i32, %arg1: i32) -> (i32, i32, i32, i32) {
    %c0_i32 = arith.constant 0 : i32
    %c0_i32_0 = arith.constant 0 : i32
    %c0_i32_1 = arith.constant 0 : i32
    return %arg0, %arg1, %c0_i32, %c0_i32_0 : i32, i32, i32, i32
  }
  func.func @transform_1(%arg0: i32, %arg1: i32) -> (i32, i32, i32) {
    %c0_i32 = arith.constant 0 : i32
    %c0_i32_0 = arith.constant 0 : i32
    return %arg0, %arg1, %c0_i32 : i32, i32, i32
  }
  func.func @transform_2(%arg0: i32, %arg1: i32) -> (i32, i32, i32) {
    %c0_i32 = arith.constant 0 : i32
    %c0_i32_0 = arith.constant 0 : i32
    %c0_i32_1 = arith.constant 0 : i32
    return %arg0, %c0_i32, %c0_i32_0 : i32, i32, i32
  }
  func.func @transform_3(%arg0: i32, %arg1: i32) -> (i32, i32) {
    %c0_i32 = arith.constant 0 : i32
    %c0_i32_0 = arith.constant 0 : i32
    %c0_i32_1 = arith.constant 0 : i32
    return %c0_i32, %c0_i32_0 : i32, i32
  }
  func.func @transform_4(%arg0: i32, %arg1: i32) -> (i32, i32) {
    %c0_i32 = arith.constant 0 : i32
    %c0_i32_0 = arith.constant 0 : i32
    %c0_i32_1 = arith.constant 0 : i32
    return %c0_i32, %c0_i32_0 : i32, i32
  }
  func.func @transform_5(%arg0: i32, %arg1: i32) -> (i32, i32) {
    %c0_i32 = arith.constant 0 : i32
    %c0_i32_0 = arith.constant 0 : i32
    %c0_i32_1 = arith.constant 0 : i32
    return %c0_i32, %c0_i32_0 : i32, i32
  }
  func.func @transform_6(%arg0: i32, %arg1: i32) -> (i32, i32) {
    %c0_i32 = arith.constant 0 : i32
    %c0_i32_0 = arith.constant 0 : i32
    %c0_i32_1 = arith.constant 0 : i32
    return %c0_i32, %c0_i32_0 : i32, i32
  }
  func.func @transform_7(%arg0: i32, %arg1: i32) -> (i32, i32, i32, i32) {
    %c0_i32 = arith.constant 0 : i32
    %c0_i32_0 = arith.constant 0 : i32
    %c0_i32_1 = arith.constant 0 : i32
    return %arg0, %arg1, %c0_i32, %c0_i32_0 : i32, i32, i32, i32
  }
  func.func @transform_8(%arg0: i32, %arg1: i32) -> (i32, i32, i32) {
    %c0_i32 = arith.constant 0 : i32
    %c0_i32_0 = arith.constant 0 : i32
    return %arg0, %arg1, %c0_i32 : i32, i32, i32
  }
  func.func @transform_9(%arg0: i32, %arg1: i32) -> (i32, i32, i32) {
    %c0_i32 = arith.constant 0 : i32
    %c0_i32_0 = arith.constant 0 : i32
    %c0_i32_1 = arith.constant 0 : i32
    return %arg0, %c0_i32, %c0_i32_0 : i32, i32, i32
  }
}

</mosaic_0001>

<llo_original>
// kernel: tpu_custom_call.1
$region0: #{tpu_custom_call.1}
  #allocation0 [shape = 'u32[]', space=smem, size = 0x4, offset = 0x4, fixed_abs, tag = 'smem constant byte address 0x4 - core index']
  #allocation1 [shape = 'u32[144,128]{1,0:T(1,128)}', space=vmem, size = 0x12000, scoped, tag = 'internal scratch']
  #allocation2 [shape = 'f32[16,8]{1,0:T(8,128)}', space=vmem, size = 0x2000, scoped, tag = 'scratch operand']
  %s0 = inlined_call_operand.vmem [shape: f32[2,16,16,4], index: 0, kind: input, shape index: {}]
  %s1 = inlined_call_operand.vmem [shape: f32[2,16,4], index: 1, kind: input, shape index: {}]
  %s2 = inlined_call_operand.vmem [shape: f32[2,16,4], index: 2, kind: input, shape index: {}]
  %s3 = inlined_call_operand.vmem [shape: f32[4,8], index: 3, kind: input, shape index: {}]
  %s4 = inlined_call_operand.vmem [shape: f32[4,8], index: 4, kind: input, shape index: {}]
  %s5 = inlined_call_operand.vmem [shape: f32[4,8], index: 5, kind: input, shape index: {}]
  %s6 = inlined_call_operand.vmem [shape: f32[1,8], index: 6, kind: input, shape index: {}]
  %s7 = inlined_call_operand.vmem [shape: f32[2,16,16,8], index: 7, kind: output, shape index: {0}]
  %s8 = inlined_call_operand.vmem [shape: f32[2,16,8], index: 8, kind: output, shape index: {1}]
  %s9 = inlined_call_operand.vmem [shape: f32[2,16,8], index: 9, kind: output, shape index: {2}]
  %10 = xla_tuple %s7, %s8, %s9
  %s11 = sld [smem:[#allocation0]]
  $region89: #{tpu_custom_call.1} parent=0
    _
  %s13 = ssub.s32 1, %s11
  %s14 = scalar_select 0, %s13, %s11
  loop: start=0, step=1, limit=6
  $region2: #{tpu_custom_call.1} parent=0 // loop_pre_header
    _
  $region3: #{tpu_custom_call.1} parent=0 // loop_header
    %s16 = sphi 0, %s20
    %p17 = scmp.ge.s32.totalorder %s16, 6
    %s23 = sphi 0, %s35
    %s24 = sphi 0, %s31
    %s25 = sphi 0, %s23
    %s26 = sphi 0, %s24
    %s27 = sphi 0, %s25
    %s28 = sphi 0, %s26
    %s40 = sphi 0, %s42
    %s43 = sphi 0, %s40
    %s44 = sphi 0, %s43
    %s60 = sphi 0, %s44
    %s68 = sphi 0, %s70
    %s71 = sphi 0, %s68
    %s72 = sphi 0, %s71
    %s88 = sphi 0, %s72
    %s94 = sphi 0, %s96
    %s97 = sphi 0, %s94
    %s98 = sphi 0, %s97
    %s114 = sphi 0, %s98
    %s118 = sphi 0, %s118
    %s120 = sphi 0, %s118
    %s121 = sphi 0, %s120
    %s135 = sphi 0, %s121
    %s139 = sphi 0, %s139
    %s141 = sphi 0, %s139
    %s142 = sphi 0, %s141
    %s156 = sphi 0, %s142
    %s160 = sphi 0, %s160
    %s162 = sphi 0, %s160
    %s163 = sphi 0, %s162
    %s177 = sphi 0, %s163
    %s181 = sphi 0, %s181
    %s183 = sphi 0, %s181
    %s184 = sphi 0, %s183
    %s198 = sphi 0, %s184
    %s206 = sphi 0, %s208
    %s209 = sphi 0, %s206
    %s210 = sphi 0, %s209
    %s226 = sphi 0, %s210
    %s234 = sphi 0, %s236
    %s237 = sphi 0, %s234
    %s238 = sphi 0, %s237
    %s254 = sphi 0, %s238
    %s260 = sphi 0, %s262
    %s263 = sphi 0, %s260
    %s264 = sphi 0, %s263
    %s280 = sphi 0, %s264
  $region4: #{tpu_custom_call.1} parent=0 // loop_header_branch
    %19 = sbr.rel (%p17) target = $region8
  $region5: #{tpu_custom_call.1} parent=0 // loop_body
    %s21 = ssub.s32 %s16, 1
    %s22 = ssub.s32 %s16, 2
    %s29 = sadd.s32 1, %s24
    %p30 = scmp.ge.s32.totalorder %s29, 2
    %s31 = scalar_select %p30, 0, %s29
    %s32 = sadd.s32 1, %s23
    %s33 = scalar_select %p30, %s32, %s23
    %p34 = scmp.ge.s32.totalorder %s33, 2
    %s35 = scalar_select %p34, 0, %s33
    %s36 = ssub.s32 %s23, %s35
    %s37 = ssub.s32 %s24, %s31
    %s38 = sor.u32 %s36, %s37
    %p39 = scmp.eq.s32.totalorder %s38, 0
    %s41 = sadd.s32 %s40, 1
    %s42 = scalar_select %p39, %s40, %s41
    %p45 = pneg %p39
    %p46 = scmp.eq.s32.totalorder %s16, 3
    %p47 = por %p45, %p46
    %p48 = scmp.ne.s32.totalorder %s40, %s43
    %p49 = scmp.eq.s32.totalorder %s16, 0
    %p50 = por %p48, %p49
    %p51 = scmp.ne.s32.totalorder %s40, %s43
    %p52 = scmp.eq.s32.totalorder %s21, 3
    %p53 = por %p51, %p52
    %p54 = scmp.ne.s32.totalorder %s43, %s44
    %p55 = scmp.eq.s32.totalorder %s21, 0
    %p56 = por %p54, %p55
    %p57 = scmp.ne.s32.totalorder %s43, %s44
    %p58 = scmp.eq.s32.totalorder %s22, 3
    %p59 = por %p57, %p58
    %p61 = scmp.ne.s32.totalorder %s44, %s60
    %p62 = scmp.eq.s32.totalorder %s22, 0
    %p63 = por %p61, %p62
    %s64 = ssub.s32 %s23, %s35
    %s65 = ssub.s32 %s24, %s31
    %s66 = sor.u32 %s64, %s65
    %p67 = scmp.eq.s32.totalorder %s66, 0
    %s69 = sadd.s32 %s68, 1
    %s70 = scalar_select %p67, %s68, %s69
    %p73 = pneg %p67
    %p74 = scmp.eq.s32.totalorder %s16, 3
    %p75 = por %p73, %p74
    %p76 = scmp.ne.s32.totalorder %s68, %s71
    %p77 = scmp.eq.s32.totalorder %s16, 0
    %p78 = por %p76, %p77
    %p79 = scmp.ne.s32.totalorder %s68, %s71
    %p80 = scmp.eq.s32.totalorder %s21, 3
    %p81 = por %p79, %p80
    %p82 = scmp.ne.s32.totalorder %s71, %s72
    %p83 = scmp.eq.s32.totalorder %s21, 0
    %p84 = por %p82, %p83
    %p85 = scmp.ne.s32.totalorder %s71, %s72
    %p86 = scmp.eq.s32.totalorder %s22, 3
    %p87 = por %p85, %p86
    %p89 = scmp.ne.s32.totalorder %s72, %s88
    %p90 = scmp.eq.s32.totalorder %s22, 0
    %p91 = por %p89, %p90
    %s92 = ssub.s32 %s23, %s35
    %p93 = scmp.eq.s32.totalorder %s92, 0
    %s95 = sadd.s32 %s94, 1
    %s96 = scalar_select %p93, %s94, %s95
    %p99 = pneg %p93
    %p100 = scmp.eq.s32.totalorder %s16, 3
    %p101 = por %p99, %p100
    %p102 = scmp.ne.s32.totalorder %s94, %s97
    %p103 = scmp.eq.s32.totalorder %s16, 0
    %p104 = por %p102, %p103
    %p105 = scmp.ne.s32.totalorder %s94, %s97
    %p106 = scmp.eq.s32.totalorder %s21, 3
    %p107 = por %p105, %p106
    %p108 = scmp.ne.s32.totalorder %s97, %s98
    %p109 = scmp.eq.s32.totalorder %s21, 0
    %p110 = por %p108, %p109
    %p111 = scmp.ne.s32.totalorder %s97, %s98
    %p112 = scmp.eq.s32.totalorder %s22, 3
    %p113 = por %p111, %p112
    %p115 = scmp.ne.s32.totalorder %s98, %s114
    %p116 = scmp.eq.s32.totalorder %s22, 0
    %p117 = por %p115, %p116
    %s119 = sadd.s32 %s118, 1
    %p122 = scmp.eq.s32.totalorder %s16, 3
    %p123 = scmp.ne.s32.totalorder %s118, %s120
    %p124 = scmp.eq.s32.totalorder %s16, 0
    %p125 = por %p123, %p124
    %p126 = scmp.ne.s32.totalorder %s118, %s120
    %p127 = scmp.eq.s32.totalorder %s21, 3
    %p128 = por %p126, %p127
    %p129 = scmp.ne.s32.totalorder %s120, %s121
    %p130 = scmp.eq.s32.totalorder %s21, 0
    %p131 = por %p129, %p130
    %p132 = scmp.ne.s32.totalorder %s120, %s121
    %p133 = scmp.eq.s32.totalorder %s22, 3
    %p134 = por %p132, %p133
    %p136 = scmp.ne.s32.totalorder %s121, %s135
    %p137 = scmp.eq.s32.totalorder %s22, 0
    %p138 = por %p136, %p137
    %s140 = sadd.s32 %s139, 1
    %p143 = scmp.eq.s32.totalorder %s16, 3
    %p144 = scmp.ne.s32.totalorder %s139, %s141
    %p145 = scmp.eq.s32.totalorder %s16, 0
    %p146 = por %p144, %p145
    %p147 = scmp.ne.s32.totalorder %s139, %s141
    %p148 = scmp.eq.s32.totalorder %s21, 3
    %p149 = por %p147, %p148
    %p150 = scmp.ne.s32.totalorder %s141, %s142
    %p151 = scmp.eq.s32.totalorder %s21, 0
    %p152 = por %p150, %p151
    %p153 = scmp.ne.s32.totalorder %s141, %s142
    %p154 = scmp.eq.s32.totalorder %s22, 3
    %p155 = por %p153, %p154
    %p157 = scmp.ne.s32.totalorder %s142, %s156
    %p158 = scmp.eq.s32.totalorder %s22, 0
    %p159 = por %p157, %p158
    %s161 = sadd.s32 %s160, 1
    %p164 = scmp.eq.s32.totalorder %s16, 3
    %p165 = scmp.ne.s32.totalorder %s160, %s162
    %p166 = scmp.eq.s32.totalorder %s16, 0
    %p167 = por %p165, %p166
    %p168 = scmp.ne.s32.totalorder %s160, %s162
    %p169 = scmp.eq.s32.totalorder %s21, 3
    %p170 = por %p168, %p169
    %p171 = scmp.ne.s32.totalorder %s162, %s163
    %p172 = scmp.eq.s32.totalorder %s21, 0
    %p173 = por %p171, %p172
    %p174 = scmp.ne.s32.totalorder %s162, %s163
    %p175 = scmp.eq.s32.totalorder %s22, 3
    %p176 = por %p174, %p175
    %p178 = scmp.ne.s32.totalorder %s163, %s177
    %p179 = scmp.eq.s32.totalorder %s22, 0
    %p180 = por %p178, %p179
    %s182 = sadd.s32 %s181, 1
    %p185 = scmp.eq.s32.totalorder %s16, 3
    %p186 = scmp.ne.s32.totalorder %s181, %s183
    %p187 = scmp.eq.s32.totalorder %s16, 0
    %p188 = por %p186, %p187
    %p189 = scmp.ne.s32.totalorder %s181, %s183
    %p190 = scmp.eq.s32.totalorder %s21, 3
    %p191 = por %p189, %p190
    %p192 = scmp.ne.s32.totalorder %s183, %s184
    %p193 = scmp.eq.s32.totalorder %s21, 0
    %p194 = por %p192, %p193
    %p195 = scmp.ne.s32.totalorder %s183, %s184
    %p196 = scmp.eq.s32.totalorder %s22, 3
    %p197 = por %p195, %p196
    %p199 = scmp.ne.s32.totalorder %s184, %s198
    %p200 = scmp.eq.s32.totalorder %s22, 0
    %p201 = por %p199, %p200
    %s202 = ssub.s32 %s23, %s35
    %s203 = ssub.s32 %s24, %s31
    %s204 = sor.u32 %s202, %s203
    %p205 = scmp.eq.s32.totalorder %s204, 0
    %s207 = sadd.s32 %s206, 1
    %s208 = scalar_select %p205, %s206, %s207
    %p211 = pneg %p205
    %p212 = scmp.eq.s32.totalorder %s16, 3
    %p213 = por %p211, %p212
    %p214 = scmp.ne.s32.totalorder %s206, %s209
    %p215 = scmp.eq.s32.totalorder %s16, 0
    %p216 = por %p214, %p215
    %p217 = scmp.ne.s32.totalorder %s206, %s209
    %p218 = scmp.eq.s32.totalorder %s21, 3
    %p219 = por %p217, %p218
    %p220 = scmp.ne.s32.totalorder %s209, %s210
    %p221 = scmp.eq.s32.totalorder %s21, 0
    %p222 = por %p220, %p221
    %p223 = scmp.ne.s32.totalorder %s209, %s210
    %p224 = scmp.eq.s32.totalorder %s22, 3
    %p225 = por %p223, %p224
    %p227 = scmp.ne.s32.totalorder %s210, %s226
    %p228 = scmp.eq.s32.totalorder %s22, 0
    %p229 = por %p227, %p228
    %s230 = ssub.s32 %s23, %s35
    %s231 = ssub.s32 %s24, %s31
    %s232 = sor.u32 %s230, %s231
    %p233 = scmp.eq.s32.totalorder %s232, 0
    %s235 = sadd.s32 %s234, 1
    %s236 = scalar_select %p233, %s234, %s235
    %p239 = pneg %p233
    %p240 = scmp.eq.s32.totalorder %s16, 3
    %p241 = por %p239, %p240
    %p242 = scmp.ne.s32.totalorder %s234, %s237
    %p243 = scmp.eq.s32.totalorder %s16, 0
    %p244 = por %p242, %p243
    %p245 = scmp.ne.s32.totalorder %s234, %s237
    %p246 = scmp.eq.s32.totalorder %s21, 3
    %p247 = por %p245, %p246
    %p248 = scmp.ne.s32.totalorder %s237, %s238
    %p249 = scmp.eq.s32.totalorder %s21, 0
    %p250 = por %p248, %p249
    %p251 = scmp.ne.s32.totalorder %s237, %s238
    %p252 = scmp.eq.s32.totalorder %s22, 3
    %p253 = por %p251, %p252
    %p255 = scmp.ne.s32.totalorder %s238, %s254
    %p256 = scmp.eq.s32.totalorder %s22, 0
    %p257 = por %p255, %p256
    %s258 = ssub.s32 %s23, %s35
    %p259 = scmp.eq.s32.totalorder %s258, 0
    %s261 = sadd.s32 %s260, 1
    %s262 = scalar_select %p259, %s260, %s261
    %p265 = pneg %p259
    %p266 = scmp.eq.s32.totalorder %s16, 3
    %p267 = por %p265, %p266
    %p268 = scmp.ne.s32.totalorder %s260, %s263
    %p269 = scmp.eq.s32.totalorder %s16, 0
    %p270 = por %p268, %p269
    %p271 = scmp.ne.s32.totalorder %s260, %s263
    %p272 = scmp.eq.s32.totalorder %s21, 3
    %p273 = por %p271, %p272
    %p274 = scmp.ne.s32.totalorder %s263, %s264
    %p275 = scmp.eq.s32.totalorder %s21, 0
    %p276 = por %p274, %p275
    %p277 = scmp.ne.s32.totalorder %s263, %s264
    %p278 = scmp.eq.s32.totalorder %s22, 3
    %p279 = por %p277, %p278
    %p281 = scmp.ne.s32.totalorder %s264, %s280
    %p282 = scmp.eq.s32.totalorder %s22, 0
    %p283 = por %p281, %p282
    %p284 = scmp.le.s32.totalorder 1, %s16
    %p285 = scmp.lt.s32.totalorder %s16, 5
    %p286 = pnand %p284, %p285
    %p287 = pneg %p286
    // Predicated region
    $region9: #{tpu_custom_call.1} parent=5 // pred_check
      _
    $region10: #{tpu_custom_call.1} parent=5 // pred_check_branch
      %289 = sbr.rel (%p286) target = $region12
    $region11: #{tpu_custom_call.1} parent=5 // pred_region
      %s290 = ssub.s32 %s16, 1
      // Predicated region
      $region13: #{tpu_custom_call.1} parent=11 // pred_check
        %p291 = pneg %p131
      $region14: #{tpu_custom_call.1} parent=11 // pred_check_branch
        %293 = sbr.rel (%p291) target = $region16
      $region15: #{tpu_custom_call.1} parent=11 // pred_region
        _
      $region16: #{tpu_custom_call.1} parent=11 // pred_fallthru
        _
      // Predicated region
      $region17: #{tpu_custom_call.1} parent=11 // pred_check
        %p294 = pneg %p152
      $region18: #{tpu_custom_call.1} parent=11 // pred_check_branch
        %296 = sbr.rel (%p294) target = $region20
      $region19: #{tpu_custom_call.1} parent=11 // pred_region
        _
      $region20: #{tpu_custom_call.1} parent=11 // pred_fallthru
        _
      // Predicated region
      $region21: #{tpu_custom_call.1} parent=11 // pred_check
        %p297 = pneg %p173
      $region22: #{tpu_custom_call.1} parent=11 // pred_check_branch
        %299 = sbr.rel (%p297) target = $region24
      $region23: #{tpu_custom_call.1} parent=11 // pred_region
        _
      $region24: #{tpu_custom_call.1} parent=11 // pred_fallthru
        _
      // Predicated region
      $region25: #{tpu_custom_call.1} parent=11 // pred_check
        %p300 = pneg %p194
      $region26: #{tpu_custom_call.1} parent=11 // pred_check_branch
        %302 = sbr.rel (%p300) target = $region28
      $region27: #{tpu_custom_call.1} parent=11 // pred_region
        _
      $region28: #{tpu_custom_call.1} parent=11 // pred_fallthru
        _
    $region12: #{tpu_custom_call.1} parent=5 // pred_fallthru
      _
    %p303 = scmp.lt.s32.totalorder %s16, 4
    // Predicated region
    $region29: #{tpu_custom_call.1} parent=5 // pred_check
      %p304 = pneg %p303
    $region30: #{tpu_custom_call.1} parent=5 // pred_check_branch
      %306 = sbr.rel (%p304) target = $region32
    $region31: #{tpu_custom_call.1} parent=5 // pred_region
      // Predicated region
      $region33: #{tpu_custom_call.1} parent=31 // pred_check
        %p307 = pneg %p50
      $region34: #{tpu_custom_call.1} parent=31 // pred_check_branch
        %309 = sbr.rel (%p307) target = $region36
      $region35: #{tpu_custom_call.1} parent=31 // pred_region
        %s310 = smul.u32 8, %s24
        %p311 = scmp.lt.s32.totalorder %s23, 1
        %s312 = scalar_select %p311, %s23, 1
        %p313 = scmp.lt.s32.totalorder %s310, 15
        %s314 = scalar_select %p313, %s310, 15
        %s315 = smul.addr %s314, 2
        %s316 = smul.addr %s312, 32
        %s317 = sadd.s32 %s315, %s316
        %s318 = smul.addr %s317, 8
        %s319 = scalar_lea.vmem %s0, %s318
        %s320 = smul.u32 8, %s24
      $region36: #{tpu_custom_call.1} parent=31 // pred_fallthru
        _
      // Predicated region
      $region37: #{tpu_custom_call.1} parent=31 // pred_check
        %p321 = pneg %p78
      $region38: #{tpu_custom_call.1} parent=31 // pred_check_branch
        %323 = sbr.rel (%p321) target = $region40
      $region39: #{tpu_custom_call.1} parent=31 // pred_region
        %p324 = scmp.lt.s32.totalorder %s23, 1
        %s325 = scalar_select %p324, %s23, 1
        %p326 = scmp.lt.s32.totalorder %s24, 1
        %s327 = scalar_select %p326, %s24, 1
        %s328 = smul.addr %s325, 2
        %s329 = sadd.s32 %s327, %s328
        %s330 = smul.addr %s329, 8
        %s331 = scalar_lea.vmem %s1, %s330
      $region40: #{tpu_custom_call.1} parent=31 // pred_fallthru
        _
      // Predicated region
      $region41: #{tpu_custom_call.1} parent=31 // pred_check
        %p332 = pneg %p104
      $region42: #{tpu_custom_call.1} parent=31 // pred_check_branch
        %334 = sbr.rel (%p332) target = $region44
      $region43: #{tpu_custom_call.1} parent=31 // pred_region
        %p335 = scmp.lt.s32.totalorder %s23, 1
        %s336 = scalar_select %p335, %s23, 1
        %s337 = smul.addr %s336, 2
        %s338 = smul.addr %s337, 8
        %s339 = scalar_lea.vmem %s2, %s338
      $region44: #{tpu_custom_call.1} parent=31 // pred_fallthru
        _
    $region32: #{tpu_custom_call.1} parent=5 // pred_fallthru
      _
    %p340 = scmp.le.s32.totalorder 1, %s16
    %p341 = scmp.lt.s32.totalorder %s16, 5
    %p342 = pnand %p340, %p341
    %p343 = pneg %p342
    // Predicated region
    $region45: #{tpu_custom_call.1} parent=5 // pred_check
      _
    $region46: #{tpu_custom_call.1} parent=5 // pred_check_branch
      %345 = sbr.rel (%p342) target = $region48
    $region47: #{tpu_custom_call.1} parent=5 // pred_region
      %s346 = ssub.s32 %s16, 1
      %s347 = smul.u32 8, %s26
      %p348 = scmp.lt.s32.totalorder %s25, 1
      %s349 = scalar_select %p348, %s25, 1
      %p350 = scmp.lt.s32.totalorder %s347, 15
      %s351 = scalar_select %p350, %s347, 15
      %s352 = smul.addr %s351, 2
      %s353 = smul.addr %s349, 32
      %s354 = sadd.s32 %s352, %s353
      %s355 = smul.addr %s354, 8
      %s356 = scalar_lea.vmem %s0, %s355
      %p357 = pneg %p56
      %p358 = pneg %p53
      %p359 = scmp.lt.s32.totalorder %s25, 1
      %s360 = scalar_select %p359, %s25, 1
      %p361 = scmp.lt.s32.totalorder %s26, 1
      %s362 = scalar_select %p361, %s26, 1
      %s363 = smul.addr %s360, 2
      %s364 = sadd.s32 %s362, %s363
      %s365 = smul.addr %s364, 8
      %s366 = scalar_lea.vmem %s1, %s365
      %p367 = pneg %p84
      %p368 = pneg %p81
      %p369 = scmp.lt.s32.totalorder %s25, 1
      %s370 = scalar_select %p369, %s25, 1
      %s371 = smul.addr %s370, 2
      %s372 = smul.addr %s371, 8
      %s373 = scalar_lea.vmem %s2, %s372
      %p374 = pneg %p110
      %p375 = pneg %p107
      %p376 = pneg %p131
      %p377 = pneg %p128
      %p378 = pneg %p152
      %p379 = pneg %p149
      %p380 = pneg %p173
      %p381 = pneg %p170
      %p382 = pneg %p194
      %p383 = pneg %p191
      %p384 = pneg %p222
      %p385 = pneg %p219
      %s386 = smul.u32 8, %s26
      %p387 = scmp.lt.s32.totalorder %s25, 1
      %s388 = scalar_select %p387, %s25, 1
      %p389 = scmp.lt.s32.totalorder %s386, 15
      %s390 = scalar_select %p389, %s386, 15
      %s391 = smul.addr %s390, 2
      %s392 = smul.addr %s388, 32
      %s393 = sadd.s32 %s391, %s392
      %s394 = smul.addr %s393, 8
      %s395 = scalar_lea.vmem %s7, %s394
      %p396 = pneg %p250
      %p397 = pneg %p247
      %p398 = scmp.lt.s32.totalorder %s25, 1
      %s399 = scalar_select %p398, %s25, 1
      %p400 = scmp.lt.s32.totalorder %s26, 1
      %s401 = scalar_select %p400, %s26, 1
      %s402 = smul.addr %s399, 2
      %s403 = sadd.s32 %s401, %s402
      %s404 = smul.addr %s403, 8
      %s405 = scalar_lea.vmem %s8, %s404
      %p406 = pneg %p276
      %p407 = pneg %p273
      %p408 = scmp.lt.s32.totalorder %s25, 1
      %s409 = scalar_select %p408, %s25, 1
      %s410 = smul.addr %s409, 2
      %s411 = smul.addr %s410, 8
      %s412 = scalar_lea.vmem %s9, %s411
      %s413 = smul.u32 8, %s26
      %p414 = scmp.lt.s32.totalorder %s25, 1
      %s415 = scalar_select %p414, %s25, 1
      %p416 = scmp.lt.s32.totalorder %s413, 15
      %s417 = scalar_select %p416, %s413, 15
      %s418 = smul.addr %s417, 2
      %s419 = smul.addr %s415, 32
      %s420 = sadd.s32 %s418, %s419
      %s421 = smul.addr %s420, 8
      %s422 = scalar_lea.vmem %s0, %s421
      %s423 = smul.u32 8, %s26
      %p424 = scmp.lt.s32.totalorder %s25, 1
      %s425 = scalar_select %p424, %s25, 1
      %p426 = scmp.lt.s32.totalorder %s26, 1
      %s427 = scalar_select %p426, %s26, 1
      %s428 = smul.addr %s425, 2
      %s429 = sadd.s32 %s427, %s428
      %s430 = smul.addr %s429, 8
      %s431 = scalar_lea.vmem %s1, %s430
      %p432 = scmp.lt.s32.totalorder %s25, 1
      %s433 = scalar_select %p432, %s25, 1
      %s434 = smul.addr %s433, 2
      %s435 = smul.addr %s434, 8
      %s436 = scalar_lea.vmem %s2, %s435
      %s437 = smul.u32 8, %s26
      %p438 = scmp.lt.s32.totalorder %s25, 1
      %s439 = scalar_select %p438, %s25, 1
      %p440 = scmp.lt.s32.totalorder %s437, 15
      %s441 = scalar_select %p440, %s437, 15
      %s442 = smul.addr %s441, 2
      %s443 = smul.addr %s439, 32
      %s444 = sadd.s32 %s442, %s443
      %s445 = smul.addr %s444, 8
      %s446 = scalar_lea.vmem %s7, %s445
      %s447 = smul.u32 8, %s26
      %p448 = scmp.lt.s32.totalorder %s25, 1
      %s449 = scalar_select %p448, %s25, 1
      %p450 = scmp.lt.s32.totalorder %s26, 1
      %s451 = scalar_select %p450, %s26, 1
      %s452 = smul.addr %s449, 2
      %s453 = sadd.s32 %s451, %s452
      %s454 = smul.addr %s453, 8
      %s455 = scalar_lea.vmem %s8, %s454
      %p456 = scmp.lt.s32.totalorder %s25, 1
      %s457 = scalar_select %p456, %s25, 1
      %s458 = smul.addr %s457, 2
      %s459 = smul.addr %s458, 8
      %s460 = scalar_lea.vmem %s9, %s459
      %p461 = scmp.eq.s32.totalorder %s26, 0
      // Predicated region
      $region49: #{tpu_custom_call.1} parent=47 // pred_check
        %p462 = pneg %p461
      $region50: #{tpu_custom_call.1} parent=47 // pred_check_branch
        %464 = sbr.rel (%p462) target = $region52
      $region51: #{tpu_custom_call.1} parent=47 // pred_region
        %v465 = vld [vmem:[%s436] sm:$0xff]
        %v466 = vld [vmem:[%s436 + $0x8] sm:$0xff]
        %v467 = vld [vmem:[%s5] sm:$0xf]
        %v468 = vld [vmem:[%s6] sm:$0x1]
        %v470 = vlaneseq
        %v471 = vshrl.u32 %v470, 7
        %v472 = vsub.s32 0, %v471
        %v473 = vrot.slane %v468, %v472
        %vm475 = vcmask 31744
        %v477 = vsel %vm475, %v465, 0
        %v480 = vsel %vm475, %v466, 0
        %vm482 = vcmask 1043456
        %v484 = vsel %vm482, %v467, 0
        %486 = vmatprep.subr.mxu0 0.0
        %487 = vmatpush1.msra.mxu0 0.0
        %488 = vmatprep.subr.mxu0 0.0
        %489 = vmatpush1.msra.mxu0 0.0
        %490 = vmatprep.subr.mxu0 0.0
        %491 = vmatpush1.msra.mxu0 0.0
        %492 = vmatprep.subr.mxu0 0.0
        %493 = vmatpush1.msra.mxu0 0.0
        %494 = vmatprep.subr.mxu0 0.0
        %495 = vmatpush1.msra.mxu0 0.0
        %496 = vmatprep.subr.mxu0 0.0
        %497 = vmatpush1.msra.mxu0 0.0
        %498 = vmatprep.subr.mxu0 0.0
        %499 = vmatpush1.msra.mxu0 0.0
        %500 = vmatprep.subr.mxu0 0.0
        %501 = vmatpush1.msra.mxu0 0.0
        %502 = vmatprep.subr.mxu0 0.0
        %503 = vmatpush1.msra.mxu0 0.0
        %504 = vmatprep.subr.mxu0 0.0
        %505 = vmatpush1.msra.mxu0 0.0
        %506 = vmatprep.subr.mxu0 0.0
        %507 = vmatpush1.msra.mxu0 0.0
        %508 = vmatprep.subr.mxu0 0.0
        %509 = vmatpush1.msra.mxu0 0.0
        %510 = vmatprep.subr.mxu0 0.0
        %511 = vmatpush1.msra.mxu0 0.0
        %512 = vmatprep.subr.mxu0 0.0
        %513 = vmatpush1.msra.mxu0 0.0
        %514 = vmatprep.subr.mxu0 0.0
        %515 = vmatpush1.msra.mxu0 0.0
        %516 = vmatprep.subr.mxu0 0.0
        %517 = vmatpush1.msra.mxu0 %v484
        %518 = vmatprep.subr.mxu0 0.0
        %519 = vmatpush2.msra.mxu0 0.0
        %520 = vmatprep.subr.mxu0 0.0
        %521 = vmatpush2.msra.mxu0 0.0
        %522 = vmatprep.subr.mxu0 0.0
        %523 = vmatpush2.msra.mxu0 0.0
        %524 = vmatprep.subr.mxu0 0.0
        %525 = vmatpush2.msra.mxu0 0.0
        %526 = vmatprep.subr.mxu0 0.0
        %527 = vmatpush2.msra.mxu0 0.0
        %528 = vmatprep.subr.mxu0 0.0
        %529 = vmatpush2.msra.mxu0 0.0
        %530 = vmatprep.subr.mxu0 0.0
        %531 = vmatpush2.msra.mxu0 0.0
        %532 = vmatprep.subr.mxu0 0.0
        %533 = vmatpush2.msra.mxu0 0.0
        %534 = vmatprep.subr.mxu0 0.0
        %535 = vmatpush2.msra.mxu0 0.0
        %536 = vmatprep.subr.mxu0 0.0
        %537 = vmatpush2.msra.mxu0 0.0
        %538 = vmatprep.subr.mxu0 0.0
        %539 = vmatpush2.msra.mxu0 0.0
        %540 = vmatprep.subr.mxu0 0.0
        %541 = vmatpush2.msra.mxu0 0.0
        %542 = vmatprep.subr.mxu0 0.0
        %543 = vmatpush2.msra.mxu0 0.0
        %544 = vmatprep.subr.mxu0 0.0
        %545 = vmatpush2.msra.mxu0 0.0
        %546 = vmatprep.subr.mxu0 0.0
        %547 = vmatpush2.msra.mxu0 0.0
        %548 = vmatprep.subr.mxu0 0.0
        %549 = vmatpush2.msra.mxu0 0.0
        %550 = vmatprep.mubr.f32.mxu0 0.0
        %551 = vmatmul.mubr.f32.gmra.mxu0 %v477
        %v552 = vpop.f32.mrf.mxu0
        %v553 = vadd.f32 %v473, %v552
        %v554 = vpop.f32.mrf.mxu0
        %555 = vmatprep.mubr.f32.mxu0 0.0
        %556 = vmatmul.mubr.f32.gmra.mxu0 %v480
        %v557 = vpop.f32.mrf.mxu0
        %v558 = vadd.f32 %v473, %v557
        %v559 = vpop.f32.mrf.mxu0
        %560 = vdwg.mxu0
        %vm561 = vcmask 64512
        %562 = vst.msk [vmem:[#allocation2] sm:$0xff] %vm561, %v553
        %563 = vst.msk [vmem:[#allocation2 + $0x8] sm:$0xff] %vm561, %v558
      $region52: #{tpu_custom_call.1} parent=47 // pred_fallthru
        _
      %v564 = vld [vmem:[%s422] sm:$0xff]
      %v565 = vld [vmem:[%s422 + $0x8] sm:$0xff]
      %v566 = vld [vmem:[%s422 + $0x10] sm:$0xff]
      %v567 = vld [vmem:[%s422 + $0x18] sm:$0xff]
      %v568 = vld [vmem:[%s422 + $0x20] sm:$0xff]
      %v569 = vld [vmem:[%s422 + $0x28] sm:$0xff]
      %v570 = vld [vmem:[%s422 + $0x30] sm:$0xff]
      %v571 = vld [vmem:[%s422 + $0x38] sm:$0xff]
      %v572 = vld [vmem:[%s422 + $0x40] sm:$0xff]
      %v573 = vld [vmem:[%s422 + $0x48] sm:$0xff]
      %v574 = vld [vmem:[%s422 + $0x50] sm:$0xff]
      %v575 = vld [vmem:[%s422 + $0x58] sm:$0xff]
      %v576 = vld [vmem:[%s422 + $0x60] sm:$0xff]
      %v577 = vld [vmem:[%s422 + $0x68] sm:$0xff]
      %v578 = vld [vmem:[%s422 + $0x70] sm:$0xff]
      %v579 = vld [vmem:[%s422 + $0x78] sm:$0xff]
      %v580 = vld [vmem:[%s3] sm:$0xf]
      %vm581 = vcmask 31744
      %v583 = vsel %vm581, %v564, 0
      %v586 = vsel %vm581, %v565, 0
      %v589 = vsel %vm581, %v566, 0
      %v592 = vsel %vm581, %v567, 0
      %v595 = vsel %vm581, %v568, 0
      %v598 = vsel %vm581, %v569, 0
      %v601 = vsel %vm581, %v570, 0
      %v604 = vsel %vm581, %v571, 0
      %v607 = vsel %vm581, %v572, 0
      %v610 = vsel %vm581, %v573, 0
      %v613 = vsel %vm581, %v574, 0
      %v616 = vsel %vm581, %v575, 0
      %v619 = vsel %vm581, %v576, 0
      %v622 = vsel %vm581, %v577, 0
      %v625 = vsel %vm581, %v578, 0
      %v628 = vsel %vm581, %v579, 0
      %vm630 = vcmask 1043456
      %v632 = vsel %vm630, %v580, 0
      %634 = vmatprep.subr.mxu0 0.0
      %635 = vmatpush1.msra.mxu0 0.0
      %636 = vmatprep.subr.mxu0 0.0
      %637 = vmatpush1.msra.mxu0 0.0
      %638 = vmatprep.subr.mxu0 0.0
      %639 = vmatpush1.msra.mxu0 0.0
      %640 = vmatprep.subr.mxu0 0.0
      %641 = vmatpush1.msra.mxu0 0.0
      %642 = vmatprep.subr.mxu0 0.0
      %643 = vmatpush1.msra.mxu0 0.0
      %644 = vmatprep.subr.mxu0 0.0
      %645 = vmatpush1.msra.mxu0 0.0
      %646 = vmatprep.subr.mxu0 0.0
      %647 = vmatpush1.msra.mxu0 0.0
      %648 = vmatprep.subr.mxu0 0.0
      %649 = vmatpush1.msra.mxu0 0.0
      %650 = vmatprep.subr.mxu0 0.0
      %651 = vmatpush1.msra.mxu0 0.0
      %652 = vmatprep.subr.mxu0 0.0
      %653 = vmatpush1.msra.mxu0 0.0
      %654 = vmatprep.subr.mxu0 0.0
      %655 = vmatpush1.msra.mxu0 0.0
      %656 = vmatprep.subr.mxu0 0.0
      %657 = vmatpush1.msra.mxu0 0.0
      %658 = vmatprep.subr.mxu0 0.0
      %659 = vmatpush1.msra.mxu0 0.0
      %660 = vmatprep.subr.mxu0 0.0
      %661 = vmatpush1.msra.mxu0 0.0
      %662 = vmatprep.subr.mxu0 0.0
      %663 = vmatpush1.msra.mxu0 0.0
      %664 = vmatprep.subr.mxu0 0.0
      %665 = vmatpush1.msra.mxu0 %v632
      %666 = vmatprep.subr.mxu0 0.0
      %667 = vmatpush2.msra.mxu0 0.0
      %668 = vmatprep.subr.mxu0 0.0
      %669 = vmatpush2.msra.mxu0 0.0
      %670 = vmatprep.subr.mxu0 0.0
      %671 = vmatpush2.msra.mxu0 0.0
      %672 = vmatprep.subr.mxu0 0.0
      %673 = vmatpush2.msra.mxu0 0.0
      %674 = vmatprep.subr.mxu0 0.0
      %675 = vmatpush2.msra.mxu0 0.0
      %676 = vmatprep.subr.mxu0 0.0
      %677 = vmatpush2.msra.mxu0 0.0
      %678 = vmatprep.subr.mxu0 0.0
      %679 = vmatpush2.msra.mxu0 0.0
      %680 = vmatprep.subr.mxu0 0.0
      %681 = vmatpush2.msra.mxu0 0.0
      %682 = vmatprep.subr.mxu0 0.0
      %683 = vmatpush2.msra.mxu0 0.0
      %684 = vmatprep.subr.mxu0 0.0
      %685 = vmatpush2.msra.mxu0 0.0
      %686 = vmatprep.subr.mxu0 0.0
      %687 = vmatpush2.msra.mxu0 0.0
      %688 = vmatprep.subr.mxu0 0.0
      %689 = vmatpush2.msra.mxu0 0.0
      %690 = vmatprep.subr.mxu0 0.0
      %691 = vmatpush2.msra.mxu0 0.0
      %692 = vmatprep.subr.mxu0 0.0
      %693 = vmatpush2.msra.mxu0 0.0
      %694 = vmatprep.subr.mxu0 0.0
      %695 = vmatpush2.msra.mxu0 0.0
      %696 = vmatprep.subr.mxu0 0.0
      %697 = vmatpush2.msra.mxu0 0.0
      %698 = vmatprep.mubr.f32.mxu0 0.0
      %699 = vmatmul.mubr.f32.gmra.mxu0 %v583
      %v700 = vpop.f32.mrf.mxu0
      %v701 = vadd.f32 0.0, %v700
      %v702 = vpop.f32.mrf.mxu0
      %703 = vmatprep.mubr.f32.mxu0 0.0
      %704 = vmatmul.mubr.f32.gmra.mxu0 %v586
      %v705 = vpop.f32.mrf.mxu0
      %v706 = vadd.f32 0.0, %v705
      %v707 = vpop.f32.mrf.mxu0
      %708 = vmatprep.mubr.f32.mxu0 0.0
      %709 = vmatmul.mubr.f32.gmra.mxu0 %v589
      %v710 = vpop.f32.mrf.mxu0
      %v711 = vadd.f32 0.0, %v710
      %v712 = vpop.f32.mrf.mxu0
      %713 = vmatprep.mubr.f32.mxu0 0.0
      %714 = vmatmul.mubr.f32.gmra.mxu0 %v592
      %v715 = vpop.f32.mrf.mxu0
      %v716 = vadd.f32 0.0, %v715
      %v717 = vpop.f32.mrf.mxu0
      %718 = vmatprep.mubr.f32.mxu0 0.0
      %719 = vmatmul.mubr.f32.gmra.mxu0 %v595
      %v720 = vpop.f32.mrf.mxu0
      %v721 = vadd.f32 0.0, %v720
      %v722 = vpop.f32.mrf.mxu0
      %723 = vmatprep.mubr.f32.mxu0 0.0
      %724 = vmatmul.mubr.f32.gmra.mxu0 %v598
      %v725 = vpop.f32.mrf.mxu0
      %v726 = vadd.f32 0.0, %v725
      %v727 = vpop.f32.mrf.mxu0
      %728 = vmatprep.mubr.f32.mxu0 0.0
      %729 = vmatmul.mubr.f32.gmra.mxu0 %v601
      %v730 = vpop.f32.mrf.mxu0
      %v731 = vadd.f32 0.0, %v730
      %v732 = vpop.f32.mrf.mxu0
      %733 = vmatprep.mubr.f32.mxu0 0.0
      %734 = vmatmul.mubr.f32.gmra.mxu0 %v604
      %v735 = vpop.f32.mrf.mxu0
      %v736 = vadd.f32 0.0, %v735
      %v737 = vpop.f32.mrf.mxu0
      %738 = vmatprep.mubr.f32.mxu0 0.0
      %739 = vmatmul.mubr.f32.gmra.mxu0 %v607
      %v740 = vpop.f32.mrf.mxu0
      %v741 = vadd.f32 0.0, %v740
      %v742 = vpop.f32.mrf.mxu0
      %743 = vmatprep.mubr.f32.mxu0 0.0
      %744 = vmatmul.mubr.f32.gmra.mxu0 %v610
      %v745 = vpop.f32.mrf.mxu0
      %v746 = vadd.f32 0.0, %v745
      %v747 = vpop.f32.mrf.mxu0
      %748 = vmatprep.mubr.f32.mxu0 0.0
      %749 = vmatmul.mubr.f32.gmra.mxu0 %v613
      %v750 = vpop.f32.mrf.mxu0
      %v751 = vadd.f32 0.0, %v750
      %v752 = vpop.f32.mrf.mxu0
      %753 = vmatprep.mubr.f32.mxu0 0.0
      %754 = vmatmul.mubr.f32.gmra.mxu0 %v616
      %v755 = vpop.f32.mrf.mxu0
      %v756 = vadd.f32 0.0, %v755
      %v757 = vpop.f32.mrf.mxu0
      %758 = vmatprep.mubr.f32.mxu0 0.0
      %759 = vmatmul.mubr.f32.gmra.mxu0 %v619
      %v760 = vpop.f32.mrf.mxu0
      %v761 = vadd.f32 0.0, %v760
      %v762 = vpop.f32.mrf.mxu0
      %763 = vmatprep.mubr.f32.mxu0 0.0
      %764 = vmatmul.mubr.f32.gmra.mxu0 %v622
      %v765 = vpop.f32.mrf.mxu0
      %v766 = vadd.f32 0.0, %v765
      %v767 = vpop.f32.mrf.mxu0
      %768 = vmatprep.mubr.f32.mxu0 0.0
      %769 = vmatmul.mubr.f32.gmra.mxu0 %v625
      %v770 = vpop.f32.mrf.mxu0
      %v771 = vadd.f32 0.0, %v770
      %v772 = vpop.f32.mrf.mxu0
      %773 = vmatprep.mubr.f32.mxu0 0.0
      %774 = vmatmul.mubr.f32.gmra.mxu0 %v628
      %v775 = vpop.f32.mrf.mxu0
      %v776 = vadd.f32 0.0, %v775
      %v777 = vpop.f32.mrf.mxu0
      %778 = vdwg.mxu0
      %v779 = vld [vmem:[%s431] sm:$0xff]
      %v780 = vld [vmem:[%s4] sm:$0xf]
      %v782 = vsel %vm581, %v779, 0
      %v785 = vsel %vm630, %v780, 0
      %787 = vmatprep.subr.mxu0 0.0
      %788 = vmatpush1.msra.mxu0 0.0
      %789 = vmatprep.subr.mxu0 0.0
      %790 = vmatpush1.msra.mxu0 0.0
      %791 = vmatprep.subr.mxu0 0.0
      %792 = vmatpush1.msra.mxu0 0.0
      %793 = vmatprep.subr.mxu0 0.0
      %794 = vmatpush1.msra.mxu0 0.0
      %795 = vmatprep.subr.mxu0 0.0
      %796 = vmatpush1.msra.mxu0 0.0
      %797 = vmatprep.subr.mxu0 0.0
      %798 = vmatpush1.msra.mxu0 0.0
      %799 = vmatprep.subr.mxu0 0.0
      %800 = vmatpush1.msra.mxu0 0.0
      %801 = vmatprep.subr.mxu0 0.0
      %802 = vmatpush1.msra.mxu0 0.0
      %803 = vmatprep.subr.mxu0 0.0
      %804 = vmatpush1.msra.mxu0 0.0
      %805 = vmatprep.subr.mxu0 0.0
      %806 = vmatpush1.msra.mxu0 0.0
      %807 = vmatprep.subr.mxu0 0.0
      %808 = vmatpush1.msra.mxu0 0.0
      %809 = vmatprep.subr.mxu0 0.0
      %810 = vmatpush1.msra.mxu0 0.0
      %811 = vmatprep.subr.mxu0 0.0
      %812 = vmatpush1.msra.mxu0 0.0
      %813 = vmatprep.subr.mxu0 0.0
      %814 = vmatpush1.msra.mxu0 0.0
      %815 = vmatprep.subr.mxu0 0.0
      %816 = vmatpush1.msra.mxu0 0.0
      %817 = vmatprep.subr.mxu0 0.0
      %818 = vmatpush1.msra.mxu0 %v785
      %819 = vmatprep.subr.mxu0 0.0
      %820 = vmatpush2.msra.mxu0 0.0
      %821 = vmatprep.subr.mxu0 0.0
      %822 = vmatpush2.msra.mxu0 0.0
      %823 = vmatprep.subr.mxu0 0.0
      %824 = vmatpush2.msra.mxu0 0.0
      %825 = vmatprep.subr.mxu0 0.0
      %826 = vmatpush2.msra.mxu0 0.0
      %827 = vmatprep.subr.mxu0 0.0
      %828 = vmatpush2.msra.mxu0 0.0
      %829 = vmatprep.subr.mxu0 0.0
      %830 = vmatpush2.msra.mxu0 0.0
      %831 = vmatprep.subr.mxu0 0.0
      %832 = vmatpush2.msra.mxu0 0.0
      %833 = vmatprep.subr.mxu0 0.0
      %834 = vmatpush2.msra.mxu0 0.0
      %835 = vmatprep.subr.mxu0 0.0
      %836 = vmatpush2.msra.mxu0 0.0
      %837 = vmatprep.subr.mxu0 0.0
      %838 = vmatpush2.msra.mxu0 0.0
      %839 = vmatprep.subr.mxu0 0.0
      %840 = vmatpush2.msra.mxu0 0.0
      %841 = vmatprep.subr.mxu0 0.0
      %842 = vmatpush2.msra.mxu0 0.0
      %843 = vmatprep.subr.mxu0 0.0
      %844 = vmatpush2.msra.mxu0 0.0
      %845 = vmatprep.subr.mxu0 0.0
      %846 = vmatpush2.msra.mxu0 0.0
      %847 = vmatprep.subr.mxu0 0.0
      %848 = vmatpush2.msra.mxu0 0.0
      %849 = vmatprep.subr.mxu0 0.0
      %850 = vmatpush2.msra.mxu0 0.0
      %851 = vmatprep.mubr.f32.mxu0 0.0
      %852 = vmatmul.mubr.f32.gmra.mxu0 %v782
      %v853 = vpop.f32.mrf.mxu0
      %v854 = vadd.f32 0.0, %v853
      %v855 = vpop.f32.mrf.mxu0
      %856 = vdwg.mxu0
      %v858 = vcombine.high %v854, %v854
      %v860 = vunpack.c.l.s4 1966171168
      %v861 = vunpack.c.0.s8 %v860
      %v862 = vlaneseq
      %v863 = vshrl.u32 %v862, 7
      %v864 = vsub.s32 %v861, %v863
      %v865 = vrot.slane %v854, %v864
      %v867 = vunpack.c.l.s4 1966171168
      %v868 = vunpack.c.0.s8 %v867
      %v869 = vlaneseq
      %v870 = vshrl.u32 %v869, 7
      %v871 = vsub.s32 %v868, %v870
      %v872 = vrot.slane %v858, %v871
      %v873 = vcombine.high %v865, %v865
      %v874 = vcombine.high %v872, %v872
      %v876 = vunpack.c.l.s4 1966171168
      %v877 = vunpack.c.0.s8 %v876
      %v878 = vlaneseq
      %v879 = vshrl.u32 %v878, 7
      %v880 = vsub.s32 %v877, %v879
      %v881 = vrot.slane %v865, %v880
      %v883 = vunpack.c.l.s4 1966171168
      %v884 = vunpack.c.0.s8 %v883
      %v885 = vlaneseq
      %v886 = vshrl.u32 %v885, 7
      %v887 = vsub.s32 %v884, %v886
      %v888 = vrot.slane %v872, %v887
      %v890 = vunpack.c.l.s4 1966171168
      %v891 = vunpack.c.0.s8 %v890
      %v892 = vlaneseq
      %v893 = vshrl.u32 %v892, 7
      %v894 = vsub.s32 %v891, %v893
      %v895 = vrot.slane %v873, %v894
      %v897 = vunpack.c.l.s4 1966171168
      %v898 = vunpack.c.0.s8 %v897
      %v899 = vlaneseq
      %v900 = vshrl.u32 %v899, 7
      %v901 = vsub.s32 %v898, %v900
      %v902 = vrot.slane %v874, %v901
      %v903 = vcombine.high %v881, %v881
      %v904 = vcombine.high %v888, %v888
      %v905 = vcombine.high %v895, %v895
      %v906 = vcombine.high %v902, %v902
      %v907 = vlaneseq
      %v908 = vshrl.u32 %v907, 7
      %v909 = vsub.s32 0, %v908
      %v910 = vrot.slane %v881, %v909
      %v911 = vlaneseq
      %v912 = vshrl.u32 %v911, 7
      %v913 = vsub.s32 0, %v912
      %v914 = vrot.slane %v895, %v913
      %v915 = vlaneseq
      %v916 = vshrl.u32 %v915, 7
      %v917 = vsub.s32 0, %v916
      %v918 = vrot.slane %v903, %v917
      %v919 = vlaneseq
      %v920 = vshrl.u32 %v919, 7
      %v921 = vsub.s32 0, %v920
      %v922 = vrot.slane %v905, %v921
      %v923 = vlaneseq
      %v924 = vshrl.u32 %v923, 7
      %v925 = vsub.s32 0, %v924
      %v926 = vrot.slane %v888, %v925
      %v927 = vlaneseq
      %v928 = vshrl.u32 %v927, 7
      %v929 = vsub.s32 0, %v928
      %v930 = vrot.slane %v902, %v929
      %v931 = vlaneseq
      %v932 = vshrl.u32 %v931, 7
      %v933 = vsub.s32 0, %v932
      %v934 = vrot.slane %v904, %v933
      %v935 = vlaneseq
      %v936 = vshrl.u32 %v935, 7
      %v937 = vsub.s32 0, %v936
      %v938 = vrot.slane %v906, %v937
      %v947 = vadd.f32 %v701, %v910
      %v948 = vadd.f32 %v706, %v910
      %v949 = vadd.f32 %v711, %v914
      %v950 = vadd.f32 %v716, %v914
      %v951 = vadd.f32 %v721, %v918
      %v952 = vadd.f32 %v726, %v918
      %v953 = vadd.f32 %v731, %v922
      %v954 = vadd.f32 %v736, %v922
      %v955 = vadd.f32 %v741, %v926
      %v956 = vadd.f32 %v746, %v926
      %v957 = vadd.f32 %v751, %v930
      %v958 = vadd.f32 %v756, %v930
      %v959 = vadd.f32 %v761, %v934
      %v960 = vadd.f32 %v766, %v934
      %v961 = vadd.f32 %v771, %v938
      %v962 = vadd.f32 %v776, %v938
      %v963 = vld [vmem:[#allocation2] sm:$0xff]
      %v964 = vld [vmem:[#allocation2 + $0x8] sm:$0xff]
      %v965 = vadd.f32 %v947, %v963
      %v966 = vadd.f32 %v948, %v964
      %v967 = vadd.f32 %v949, %v963
      %v968 = vadd.f32 %v950, %v964
      %v969 = vadd.f32 %v951, %v963
      %v970 = vadd.f32 %v952, %v964
      %v971 = vadd.f32 %v953, %v963
      %v972 = vadd.f32 %v954, %v964
      %v973 = vadd.f32 %v955, %v963
      %v974 = vadd.f32 %v956, %v964
      %v975 = vadd.f32 %v957, %v963
      %v976 = vadd.f32 %v958, %v964
      %v977 = vadd.f32 %v959, %v963
      %v978 = vadd.f32 %v960, %v964
      %v979 = vadd.f32 %v961, %v963
      %v980 = vadd.f32 %v962, %v964
      %v981 = vmul.f32 %v965, 0.01
      %v982 = vmul.f32 %v966, 0.01
      %v983 = vmul.f32 %v967, 0.01
      %v984 = vmul.f32 %v968, 0.01
      %v985 = vmul.f32 %v969, 0.01
      %v986 = vmul.f32 %v970, 0.01
      %v987 = vmul.f32 %v971, 0.01
      %v988 = vmul.f32 %v972, 0.01
      %v989 = vmul.f32 %v973, 0.01
      %v990 = vmul.f32 %v974, 0.01
      %v991 = vmul.f32 %v975, 0.01
      %v992 = vmul.f32 %v976, 0.01
      %v993 = vmul.f32 %v977, 0.01
      %v994 = vmul.f32 %v978, 0.01
      %v995 = vmul.f32 %v979, 0.01
      %v996 = vmul.f32 %v980, 0.01
      %v997 = vmax.f32 %v965, %v981
      %v998 = vmax.f32 %v966, %v982
      %v999 = vmax.f32 %v967, %v983
      %v1000 = vmax.f32 %v968, %v984
      %v1001 = vmax.f32 %v969, %v985
      %v1002 = vmax.f32 %v970, %v986
      %v1003 = vmax.f32 %v971, %v987
      %v1004 = vmax.f32 %v972, %v988
      %v1005 = vmax.f32 %v973, %v989
      %v1006 = vmax.f32 %v974, %v990
      %v1007 = vmax.f32 %v975, %v991
      %v1008 = vmax.f32 %v976, %v992
      %v1009 = vmax.f32 %v977, %v993
      %v1010 = vmax.f32 %v978, %v994
      %v1011 = vmax.f32 %v979, %v995
      %v1012 = vmax.f32 %v980, %v996
      %vm1013 = vcmask 64512
      %1014 = vst.msk [vmem:[%s446] sm:$0xff] %vm1013, %v997
      %1015 = vst.msk [vmem:[%s446 + $0x8] sm:$0xff] %vm1013, %v998
      %1016 = vst.msk [vmem:[%s446 + $0x10] sm:$0xff] %vm1013, %v999
      %1017 = vst.msk [vmem:[%s446 + $0x18] sm:$0xff] %vm1013, %v1000
      %1018 = vst.msk [vmem:[%s446 + $0x20] sm:$0xff] %vm1013, %v1001
      %1019 = vst.msk [vmem:[%s446 + $0x28] sm:$0xff] %vm1013, %v1002
      %1020 = vst.msk [vmem:[%s446 + $0x30] sm:$0xff] %vm1013, %v1003
      %1021 = vst.msk [vmem:[%s446 + $0x38] sm:$0xff] %vm1013, %v1004
      %1022 = vst.msk [vmem:[%s446 + $0x40] sm:$0xff] %vm1013, %v1005
      %1023 = vst.msk [vmem:[%s446 + $0x48] sm:$0xff] %vm1013, %v1006
      %1024 = vst.msk [vmem:[%s446 + $0x50] sm:$0xff] %vm1013, %v1007
      %1025 = vst.msk [vmem:[%s446 + $0x58] sm:$0xff] %vm1013, %v1008
      %1026 = vst.msk [vmem:[%s446 + $0x60] sm:$0xff] %vm1013, %v1009
      %1027 = vst.msk [vmem:[%s446 + $0x68] sm:$0xff] %vm1013, %v1010
      %1028 = vst.msk [vmem:[%s446 + $0x70] sm:$0xff] %vm1013, %v1011
      %1029 = vst.msk [vmem:[%s446 + $0x78] sm:$0xff] %vm1013, %v1012
      %v1030 = vsel %vm1013, %v997, -inf
      %v1031 = vsel %vm1013, %v998, -inf
      %v1032 = vmax.f32 %v1030, %v1031
      %v1033 = vrot.slane %v1032, 4
      %v1034 = vmax.f32 %v1032, %v1033
      %v1035 = vrot.slane %v1034, 2
      %v1036 = vmax.f32 %v1034, %v1035
      %v1037 = vrot.slane %v1036, 1
      %v1038 = vmax.f32 %v1036, %v1037
      %v1039 = vsel %vm1013, %v999, -inf
      %v1040 = vsel %vm1013, %v1000, -inf
      %v1041 = vmax.f32 %v1039, %v1040
      %v1042 = vrot.slane %v1041, 4
      %v1043 = vmax.f32 %v1041, %v1042
      %v1044 = vrot.slane %v1043, 2
      %v1045 = vmax.f32 %v1043, %v1044
      %v1046 = vrot.slane %v1045, 1
      %v1047 = vmax.f32 %v1045, %v1046
      %v1048 = vsel %vm1013, %v1001, -inf
      %v1049 = vsel %vm1013, %v1002, -inf
      %v1050 = vmax.f32 %v1048, %v1049
      %v1051 = vrot.slane %v1050, 4
      %v1052 = vmax.f32 %v1050, %v1051
      %v1053 = vrot.slane %v1052, 2
      %v1054 = vmax.f32 %v1052, %v1053
      %v1055 = vrot.slane %v1054, 1
      %v1056 = vmax.f32 %v1054, %v1055
      %v1057 = vsel %vm1013, %v1003, -inf
      %v1058 = vsel %vm1013, %v1004, -inf
      %v1059 = vmax.f32 %v1057, %v1058
      %v1060 = vrot.slane %v1059, 4
      %v1061 = vmax.f32 %v1059, %v1060
      %v1062 = vrot.slane %v1061, 2
      %v1063 = vmax.f32 %v1061, %v1062
      %v1064 = vrot.slane %v1063, 1
      %v1065 = vmax.f32 %v1063, %v1064
      %v1066 = vsel %vm1013, %v1005, -inf
      %v1067 = vsel %vm1013, %v1006, -inf
      %v1068 = vmax.f32 %v1066, %v1067
      %v1069 = vrot.slane %v1068, 4
      %v1070 = vmax.f32 %v1068, %v1069
      %v1071 = vrot.slane %v1070, 2
      %v1072 = vmax.f32 %v1070, %v1071
      %v1073 = vrot.slane %v1072, 1
      %v1074 = vmax.f32 %v1072, %v1073
      %v1075 = vsel %vm1013, %v1007, -inf
      %v1076 = vsel %vm1013, %v1008, -inf
      %v1077 = vmax.f32 %v1075, %v1076
      %v1078 = vrot.slane %v1077, 4
      %v1079 = vmax.f32 %v1077, %v1078
      %v1080 = vrot.slane %v1079, 2
      %v1081 = vmax.f32 %v1079, %v1080
      %v1082 = vrot.slane %v1081, 1
      %v1083 = vmax.f32 %v1081, %v1082
      %v1084 = vsel %vm1013, %v1009, -inf
      %v1085 = vsel %vm1013, %v1010, -inf
      %v1086 = vmax.f32 %v1084, %v1085
      %v1087 = vrot.slane %v1086, 4
      %v1088 = vmax.f32 %v1086, %v1087
      %v1089 = vrot.slane %v1088, 2
      %v1090 = vmax.f32 %v1088, %v1089
      %v1091 = vrot.slane %v1090, 1
      %v1092 = vmax.f32 %v1090, %v1091
      %v1093 = vsel %vm1013, %v1011, -inf
      %v1094 = vsel %vm1013, %v1012, -inf
      %v1095 = vmax.f32 %v1093, %v1094
      %v1096 = vrot.slane %v1095, 4
      %v1097 = vmax.f32 %v1095, %v1096
      %v1098 = vrot.slane %v1097, 2
      %v1099 = vmax.f32 %v1097, %v1098
      %v1100 = vrot.slane %v1099, 1
      %v1101 = vmax.f32 %v1099, %v1100
      %vm1110 = vcmask 1041409
      %v1111 = vsel %vm1110, %v1047, %v1038
      %vm1112 = vcmask 1042434
      %v1113 = vsel %vm1112, %v1056, %v1111
      %vm1114 = vcmask 1043459
      %v1115 = vsel %vm1114, %v1065, %v1113
      %vm1116 = vcmask 1044484
      %v1117 = vsel %vm1116, %v1074, %v1115
      %vm1118 = vcmask 1045509
      %v1119 = vsel %vm1118, %v1083, %v1117
      %vm1120 = vcmask 1046534
      %v1121 = vsel %vm1120, %v1092, %v1119
      %vm1122 = vcmask 1047559
      %v1123 = vsel %vm1122, %v1101, %v1121
      %1125 = vst.msk [vmem:[%s455] sm:$0xff] %vm1013, %v1123
      %v1126 = vmax.f32 %v1030, %v1048
      %v1127 = vmax.f32 %v1039, %v1057
      %v1128 = vmax.f32 %v1126, %v1066
      %v1129 = vmax.f32 %v1127, %v1075
      %v1130 = vmax.f32 %v1128, %v1084
      %v1131 = vmax.f32 %v1129, %v1093
      %v1132 = vmax.f32 %v1130, %v1131
      %v1133 = vmax.f32 %v1031, %v1049
      %v1134 = vmax.f32 %v1040, %v1058
      %v1135 = vmax.f32 %v1133, %v1067
      %v1136 = vmax.f32 %v1134, %v1076
      %v1137 = vmax.f32 %v1135, %v1085
      %v1138 = vmax.f32 %v1136, %v1094
      %v1139 = vmax.f32 %v1137, %v1138
      // Predicated region
      $region53: #{tpu_custom_call.1} parent=47 // pred_check
        %p1140 = pneg %p461
      $region54: #{tpu_custom_call.1} parent=47 // pred_check_branch
        %1142 = sbr.rel (%p1140) target = $region56
      $region55: #{tpu_custom_call.1} parent=47 // pred_region
        %1143 = vst.msk [vmem:[%s460] sm:$0xff] %vm1013, %v1132
        %1144 = vst.msk [vmem:[%s460 + $0x8] sm:$0xff] %vm1013, %v1139
      $region56: #{tpu_custom_call.1} parent=47 // pred_fallthru
        _
      %p1145 = scmp.gt.s32.totalorder %s26, 0
      // Predicated region
      $region57: #{tpu_custom_call.1} parent=47 // pred_check
        %p1146 = pneg %p1145
      $region58: #{tpu_custom_call.1} parent=47 // pred_check_branch
        %1148 = sbr.rel (%p1146) target = $region60
      $region59: #{tpu_custom_call.1} parent=47 // pred_region
        %v1149 = vld [vmem:[%s460] sm:$0xff]
        %v1150 = vld [vmem:[%s460 + $0x8] sm:$0xff]
        %v1151 = vmax.f32 %v1149, %v1132
        %v1152 = vmax.f32 %v1150, %v1139
        %1153 = vst.msk [vmem:[%s460] sm:$0xff] %vm1013, %v1151
        %1154 = vst.msk [vmem:[%s460 + $0x8] sm:$0xff] %vm1013, %v1152
      $region60: #{tpu_custom_call.1} parent=47 // pred_fallthru
        _
      %s1155 = smul.u32 8, %s26
      %p1156 = scmp.lt.s32.totalorder %s25, 1
      %s1157 = scalar_select %p1156, %s25, 1
      %p1158 = scmp.lt.s32.totalorder %s1155, 15
      %s1159 = scalar_select %p1158, %s1155, 15
      %s1160 = smul.addr %s1159, 2
      %s1161 = smul.addr %s1157, 32
      %s1162 = sadd.s32 %s1160, %s1161
      %s1163 = smul.addr %s1162, 8
      %s1164 = scalar_lea.vmem %s7, %s1163
      %p1165 = scmp.lt.s32.totalorder %s25, 1
      %s1166 = scalar_select %p1165, %s25, 1
      %p1167 = scmp.lt.s32.totalorder %s26, 1
      %s1168 = scalar_select %p1167, %s26, 1
      %s1169 = smul.addr %s1166, 2
      %s1170 = sadd.s32 %s1168, %s1169
      %s1171 = smul.addr %s1170, 8
      %s1172 = scalar_lea.vmem %s8, %s1171
      %p1173 = scmp.lt.s32.totalorder %s25, 1
      %s1174 = scalar_select %p1173, %s25, 1
      %s1175 = smul.addr %s1174, 2
      %s1176 = smul.addr %s1175, 8
      %s1177 = scalar_lea.vmem %s9, %s1176
      // Predicated region
      $region61: #{tpu_custom_call.1} parent=47 // pred_check
        %p1178 = pneg %p219
      $region62: #{tpu_custom_call.1} parent=47 // pred_check_branch
        %1180 = sbr.rel (%p1178) target = $region64
      $region63: #{tpu_custom_call.1} parent=47 // pred_region
        %s1181 = smul.u32 8, %s26
      $region64: #{tpu_custom_call.1} parent=47 // pred_fallthru
        _
      // Predicated region
      $region65: #{tpu_custom_call.1} parent=47 // pred_check
        %p1182 = pneg %p247
      $region66: #{tpu_custom_call.1} parent=47 // pred_check_branch
        %1184 = sbr.rel (%p1182) target = $region68
      $region67: #{tpu_custom_call.1} parent=47 // pred_region
        _
      $region68: #{tpu_custom_call.1} parent=47 // pred_fallthru
        _
      // Predicated region
      $region69: #{tpu_custom_call.1} parent=47 // pred_check
        %p1185 = pneg %p273
      $region70: #{tpu_custom_call.1} parent=47 // pred_check_branch
        %1187 = sbr.rel (%p1185) target = $region72
      $region71: #{tpu_custom_call.1} parent=47 // pred_region
        _
      $region72: #{tpu_custom_call.1} parent=47 // pred_fallthru
        _
    $region48: #{tpu_custom_call.1} parent=5 // pred_fallthru
      _
    %p1188 = scmp.le.s32.totalorder 2, %s16
    // Predicated region
    $region73: #{tpu_custom_call.1} parent=5 // pred_check
      %p1189 = pneg %p1188
    $region74: #{tpu_custom_call.1} parent=5 // pred_check_branch
      %1191 = sbr.rel (%p1189) target = $region76
    $region75: #{tpu_custom_call.1} parent=5 // pred_region
      %s1192 = ssub.s32 %s16, 2
      // Predicated region
      $region77: #{tpu_custom_call.1} parent=75 // pred_check
        %p1193 = pneg %p225
      $region78: #{tpu_custom_call.1} parent=75 // pred_check_branch
        %1195 = sbr.rel (%p1193) target = $region80
      $region79: #{tpu_custom_call.1} parent=75 // pred_region
        %s1196 = smul.u32 8, %s28
        %p1197 = scmp.lt.s32.totalorder %s27, 1
        %s1198 = scalar_select %p1197, %s27, 1
        %p1199 = scmp.lt.s32.totalorder %s1196, 15
        %s1200 = scalar_select %p1199, %s1196, 15
        %s1201 = smul.addr %s1200, 2
        %s1202 = smul.addr %s1198, 32
        %s1203 = sadd.s32 %s1201, %s1202
        %s1204 = smul.addr %s1203, 8
        %s1205 = scalar_lea.vmem %s7, %s1204
      $region80: #{tpu_custom_call.1} parent=75 // pred_fallthru
        _
      // Predicated region
      $region81: #{tpu_custom_call.1} parent=75 // pred_check
        %p1206 = pneg %p253
      $region82: #{tpu_custom_call.1} parent=75 // pred_check_branch
        %1208 = sbr.rel (%p1206) target = $region84
      $region83: #{tpu_custom_call.1} parent=75 // pred_region
        %p1209 = scmp.lt.s32.totalorder %s27, 1
        %s1210 = scalar_select %p1209, %s27, 1
        %p1211 = scmp.lt.s32.totalorder %s28, 1
        %s1212 = scalar_select %p1211, %s28, 1
        %s1213 = smul.addr %s1210, 2
        %s1214 = sadd.s32 %s1212, %s1213
        %s1215 = smul.addr %s1214, 8
        %s1216 = scalar_lea.vmem %s8, %s1215
      $region84: #{tpu_custom_call.1} parent=75 // pred_fallthru
        _
      // Predicated region
      $region85: #{tpu_custom_call.1} parent=75 // pred_check
        %p1217 = pneg %p279
      $region86: #{tpu_custom_call.1} parent=75 // pred_check_branch
        %1219 = sbr.rel (%p1217) target = $region88
      $region87: #{tpu_custom_call.1} parent=75 // pred_region
        %p1220 = scmp.lt.s32.totalorder %s27, 1
        %s1221 = scalar_select %p1220, %s27, 1
        %s1222 = smul.addr %s1221, 2
        %s1223 = smul.addr %s1222, 8
        %s1224 = scalar_lea.vmem %s9, %s1223
      $region88: #{tpu_custom_call.1} parent=75 // pred_fallthru
        _
    $region76: #{tpu_custom_call.1} parent=5 // pred_fallthru
      _
  $region6: #{tpu_custom_call.1} parent=0 // loop_footer
    %s20 = sadd.s32 1, %s16
  $region7: #{tpu_custom_call.1} parent=0 // loop_footer_branch
    %15 = sbr.rel target = $region3
  $region8: #{tpu_custom_call.1} parent=0 // loop_exit
    _

</llo_original>
